<compile_context>
chip_gen: v6e
topology: v6e:2x2x1
jax: 0.10.0
libtpu: 0.0.40
codegen_flags: <defaults>
</compile_context>

<pallas_src>
import functools

import jax
import jax.numpy as jnp
from jax.experimental import pallas as pl
from jax.experimental.pallas import tpu as pltpu

EPSILON = 1e-8


def _squash_kernel(x_ref, seg_ref, o_ref, *, epsilon):
    # x_ref / o_ref : (TM, L) row tile; L = k * D lanes (lane-dense when
    #                 128 % D == 0, i.e. k capsules packed per 128-lane row).
    # seg_ref       : (L, L) static block-diagonal ones matrix.  xsq @ seg does
    #                 the per-capsule segmented sum along lanes AND broadcasts
    #                 it back to every lane of that capsule in one MXU op.
    x = x_ref[...].astype(jnp.float32)
    s2 = jnp.dot(x * x, seg_ref[...], preferred_element_type=jnp.float32)
    # coef = s2/(1+s2) * 1/sqrt(s2+eps), folded into one per-element scalar so
    # only a single broadcast multiply touches the full tile.
    coef = s2 / ((1.0 + s2) * jnp.sqrt(s2 + epsilon))
    o_ref[...] = (x * coef).astype(o_ref.dtype)


def squash_pallas(x, epsilon=EPSILON, target_block_bytes=2 << 20):
    """Capsule squash along the last axis via a Pallas TPU kernel.

    x: (..., D) array, capsule dimension last.  Returns same shape/dtype.
    """
    orig_shape = x.shape
    D = orig_shape[-1]
    R = x.size // D
    x2 = x.reshape(R, D)

    # Pack k capsules per 128-lane row when possible -> lane-dense loads/stores.
    if D < 128 and 128 % D == 0:
        k = 128 // D
    else:
        k = 1
    L = k * D

    itemsize = jnp.dtype(x.dtype).itemsize
    # keep sublane packing happy: 8 rows for 32-bit, 16 rows for 16-bit dtypes
    row_align = 8 if itemsize >= 4 else 16

    rp = pl.cdiv(R, k)  # rows in the packed (rows, L) layout

    # Row-tile size targeting ~target_block_bytes per buffer (double-buffered
    # in+out stays well under v5e's 16 MiB scoped-VMEM default).
    tm = max(row_align, target_block_bytes // max(1, L * itemsize))
    tm = min(tm, pl.cdiv(rp, row_align) * row_align)
    tm = max(row_align, (tm // row_align) * row_align)

    rp_padded = pl.cdiv(rp, tm) * tm
    r_padded = rp_padded * k
    if r_padded != R:
        # zero rows give s2 = 0 -> coef = 0 -> output 0 (no NaNs); sliced off below
        x2 = jnp.pad(x2, ((0, r_padded - R), (0, 0)))
    xp = x2.reshape(rp_padded, L)

    # Static block-diagonal all-ones (L, L) matrix: capsule-segment reducer.
    lane_block = jnp.arange(L) // D
    seg = (lane_block[:, None] == lane_block[None, :]).astype(jnp.float32)

    grid = (rp_padded // tm,)
    out = pl.pallas_call(
        functools.partial(_squash_kernel, epsilon=epsilon),
        out_shape=jax.ShapeDtypeStruct((rp_padded, L), x.dtype),
        grid_spec=pltpu.PrefetchScalarGridSpec(
            num_scalar_prefetch=0,
            grid=grid,
            in_specs=[
                pl.BlockSpec((tm, L), lambda i: (i, 0)),
                # Constant block index -> DMA'd once, reused across all steps.
                pl.BlockSpec((L, L), lambda i: (0, 0)),
            ],
            out_specs=pl.BlockSpec((tm, L), lambda i: (i, 0)),
        ),
        compiler_params=pltpu.CompilerParams(
            dimension_semantics=("parallel",),
        ),
    )(xp, seg)

    out = out.reshape(r_padded, D)[:R]
    return out.reshape(orig_shape)


def squash_ref(x, epsilon=EPSILON):
    """Pure-JAX reference matching the PyTorch module exactly."""
    xf = x.astype(jnp.float32)
    s2 = jnp.sum(xf * xf, axis=-1, keepdims=True)
    out = s2 / (1.0 + s2) * (xf / jnp.sqrt(s2 + epsilon))
    return out.astype(x.dtype)


def squash(x, epsilon=EPSILON, pallas_min_elements=4096):
    """Dispatcher: tiny inputs go to the XLA-fused path (launch overhead would
    dominate); everything else uses the Pallas kernel."""
    if x.size < pallas_min_elements:
        return squash_ref(x, epsilon)
    return squash_pallas(x, epsilon)


if __name__ == "__main__":
    key = jax.random.PRNGKey(0)
    k1, k2, k3 = jax.random.split(key, 3)

    # 1) Tiny shape (batch=2, num_capsules=8, capsule_dim=32): exercises the
    #    row-padding path; force the Pallas kernel.
    x1 = jax.random.normal(k1, (2, 8, 32), dtype=jnp.float32)
    o1 = jax.block_until_ready(squash_pallas(x1))
    r1 = squash_ref(x1)
    assert o1.shape == x1.shape and o1.dtype == x1.dtype
    assert jnp.allclose(o1, r1, atol=1e-5, rtol=1e-5), "mismatch (f32, D=32)"

    # 2) Classic CapsNet primary-capsule shape, D=16 -> 8 capsules per row.
    x2 = jax.random.normal(k2, (4, 1152, 16), dtype=jnp.float32)
    o2 = jax.block_until_ready(squash(x2))
    r2 = squash_ref(x2)
    assert o2.shape == x2.shape and o2.dtype == x2.dtype
    assert jnp.allclose(o2, r2, atol=1e-5, rtol=1e-5), "mismatch (f32, D=16)"

    # 3) bf16 input, D=32 -> 4 capsules per row, 16-row sublane alignment.
    x3 = jax.random.normal(k3, (2, 1152, 32), dtype=jnp.bfloat16)
    o3 = jax.block_until_ready(squash_pallas(x3))
    r3 = squash_ref(x3)
    assert o3.shape == x3.shape and o3.dtype == x3.dtype
    assert jnp.allclose(o3.astype(jnp.float32), r3.astype(jnp.float32),
                        atol=2e-2, rtol=2e-2), "mismatch (bf16, D=32)"

    print("KERNEL_OK")
</pallas_src>

<mosaic_0001>
module attributes {stable_mosaic.version = 11 : i64} {
  func.func @_squash_kernel(%arg0: i32, %arg1: memref<8x128xf32, #tpu.memory_space<vmem>>, %arg2: memref<128x128xf32, #tpu.memory_space<vmem>>, %arg3: memref<8x128xf32, #tpu.memory_space<vmem>>) attributes {dimension_semantics = [#tpu.dimension_semantics<parallel>], iteration_bounds = array<i64: 1>, scalar_prefetch = 0 : i64, scratch_operands = 0 : i64, tpu.core_type = #tpu.core_type<tc>, window_params = [{transform_indices = @transform_0, window_bounds = array<i64: 8, 128>}, {pipeline_mode = #tpu.pipeline_mode<synchronous>, transform_indices = @transform_1, window_bounds = array<i64: 128, 128>}, {transform_indices = @transform_2, window_bounds = array<i64: 8, 128>}]} {
    %c0 = arith.constant 0 : index
    %c0_0 = arith.constant 0 : index
    %0 = vector.load %arg1[%c0, %c0_0] : memref<8x128xf32, #tpu.memory_space<vmem>>, vector<8x128xf32>
    %1 = arith.mulf %0, %0 : vector<8x128xf32>
    %c0_1 = arith.constant 0 : index
    %c0_2 = arith.constant 0 : index
    %2 = vector.load %arg2[%c0_1, %c0_2] : memref<128x128xf32, #tpu.memory_space<vmem>>, vector<128x128xf32>
    %cst = arith.constant dense<0.000000e+00> : vector<8x128xf32>
    %3 = tpu.matmul %1, %2, %cst {dimension_numbers = #tpu.dot_dimension_numbers<[1], [0], [0], [1], [0, 0, 1, 1], [], []>} : vector<8x128xf32>, vector<128x128xf32>, vector<8x128xf32> -> vector<8x128xf32>
    %cst_3 = arith.constant 1.000000e+00 : f32
    %4 = vector.broadcast %cst_3 : f32 to vector<8x128xf32>
    %5 = arith.addf %4, %3 : vector<8x128xf32>
    %cst_4 = arith.constant 9.99999993E-9 : f32
    %6 = vector.broadcast %cst_4 : f32 to vector<8x128xf32>
    %7 = arith.addf %3, %6 : vector<8x128xf32>
    %8 = math.sqrt %7 : vector<8x128xf32>
    %9 = arith.mulf %5, %8 : vector<8x128xf32>
    %10 = arith.divf %3, %9 : vector<8x128xf32>
    %11 = arith.mulf %0, %10 : vector<8x128xf32>
    %c0_5 = arith.constant 0 : index
    %c0_6 = arith.constant 0 : index
    %12 = vector.load %arg3[%c0_5, %c0_6] : memref<8x128xf32, #tpu.memory_space<vmem>>, vector<8x128xf32>
    tpu.vector_store %arg3[%c0_5, %c0_6], %11 {strides = array<i32>} : memref<8x128xf32, #tpu.memory_space<vmem>>, vector<8x128xf32>,
    return
  }
  func.func @transform_0(%arg0: i32) -> (i32, i32) {
    %c0_i32 = arith.constant 0 : i32
    %c0_i32_0 = arith.constant 0 : i32
    return %arg0, %c0_i32 : i32, i32
  }
  func.func @transform_1(%arg0: i32) -> (i32, i32) {
    %c0_i32 = arith.constant 0 : i32
    %c0_i32_0 = arith.constant 0 : i32
    %c0_i32_1 = arith.constant 0 : i32
    return %c0_i32, %c0_i32_0 : i32, i32
  }
  func.func @transform_2(%arg0: i32) -> (i32, i32) {
    %c0_i32 = arith.constant 0 : i32
    %c0_i32_0 = arith.constant 0 : i32
    return %arg0, %c0_i32 : i32, i32
  }
}

</mosaic_0001>

<llo_original>
// kernel: tpu_custom_call.1
$region0: #{tpu_custom_call.1}
  #allocation0 [shape = 'u32[]', space=smem, size = 0x4, offset = 0x4, fixed_abs, tag = 'smem constant byte address 0x4 - core index']
  #allocation1 [shape = 'u32[144,128]{1,0:T(1,128)}', space=vmem, size = 0x12000, scoped, tag = 'internal scratch']
  %s0 = inlined_call_operand.hbm [shape: f32[8,128], index: 0, kind: input, shape index: {}]
  %s1 = inlined_call_operand.hbm [shape: f32[128,128], index: 1, kind: input, shape index: {}]
  %s2 = inlined_call_operand.hbm [shape: f32[8,128], index: 2, kind: output, shape index: {}]
  %s3 = sld [smem:[#allocation0]]
  $region26: #{tpu_custom_call.1} parent=0
    _
  %s5 = ssub.s32 1, %s3
  %s6 = scalar_select 0, %s5, %s3
  $region1: #{tpu_custom_call.1} parent=0
    #allocation2 [shape = 'u8[4096]{0}', space=vmem, size = 0x1000, scoped, tag = 'input window, operand 0, single buffered']
    #allocation3 [shape = 's32[1]{0}', space=sflag, size = 0x4, scoped, tag = 'scoped memory for tpu_custom_call.1']
    #allocation4 [shape = 's32[1]{0}', space=sflag, size = 0x4, scoped, tag = 'scoped memory for tpu_custom_call.1']
    #allocation5 [shape = 'u8[65536]{0}', space=vmem, size = 0x10000, scoped, tag = 'input window, operand 1, single buffered']
    #allocation6 [shape = 's32[1]{0}', space=sflag, size = 0x4, scoped, tag = 'scoped memory for tpu_custom_call.1']
    #allocation7 [shape = 'u8[4096]{0}', space=vmem, size = 0x1000, scoped, tag = 'output window, operand 0, single buffered']
    %7 = vsyncpa [#allocation3], 0
    %8 = vsyncpa [#allocation6], 0
    %9 = vsyncpa [#allocation4], 0
    // Predicated region
    $region2: #{tpu_custom_call.1} parent=1 // pred_check
      _
    $region3: #{tpu_custom_call.1} parent=1 // pred_check_branch
      %11 = sbr.rel (0) target = $region5
    $region4: #{tpu_custom_call.1} parent=1 // pred_region
      %s13 = ssub.s32 128, 128
      %14 = vsyncadd [#allocation3], %s13
      %s16 = sshll.u32 [#allocation2], 4
      %s17 = int_to_ptr.vmem [resolvable:$true] %s16
      %19 = dma.hbm_to_vmem [thread:$0]  %s0, 128, %s17, [#allocation3]
    $region5: #{tpu_custom_call.1} parent=1 // pred_fallthru
      _
    // Predicated region
    $region6: #{tpu_custom_call.1} parent=1 // pred_check
      _
    $region7: #{tpu_custom_call.1} parent=1 // pred_check_branch
      %21 = sbr.rel (0) target = $region9
    $region8: #{tpu_custom_call.1} parent=1 // pred_region
      %s23 = ssub.s32 2048, 2048
      %24 = vsyncadd [#allocation6], %s23
      %s25 = sshll.u32 [#allocation5], 4
      %s26 = int_to_ptr.vmem [resolvable:$true] %s25
      %31 = dma.hbm_to_vmem [thread:$0]  %s1, 2048, %s26, [#allocation6], 128, 128, 8
    $region9: #{tpu_custom_call.1} parent=1 // pred_fallthru
      _
    // Predicated region
    $region10: #{tpu_custom_call.1} parent=1 // pred_check
      _
    $region11: #{tpu_custom_call.1} parent=1 // pred_check_branch
      %33 = sbr.rel (0) target = $region13
    $region12: #{tpu_custom_call.1} parent=1 // pred_region
      %34 = dma.done [#allocation3], 128
    $region13: #{tpu_custom_call.1} parent=1 // pred_fallthru
      _
    // Predicated region
    $region14: #{tpu_custom_call.1} parent=1 // pred_check
      _
    $region15: #{tpu_custom_call.1} parent=1 // pred_check_branch
      %36 = sbr.rel (0) target = $region17
    $region16: #{tpu_custom_call.1} parent=1 // pred_region
      %37 = dma.done [#allocation6], 2048
    $region17: #{tpu_custom_call.1} parent=1 // pred_fallthru
      _
    %v38 = vld [vmem:[#allocation2] sm:$0xff]
    %v39 = vmul.f32 %v38, %v38
    %v40 = vld [vmem:[#allocation5] sm:$0xff]
    %v41 = vld [vmem:[#allocation5 + $0x8] sm:$0xff]
    %v42 = vld [vmem:[#allocation5 + $0x10] sm:$0xff]
    %v43 = vld [vmem:[#allocation5 + $0x18] sm:$0xff]
    %v44 = vld [vmem:[#allocation5 + $0x20] sm:$0xff]
    %v45 = vld [vmem:[#allocation5 + $0x28] sm:$0xff]
    %v46 = vld [vmem:[#allocation5 + $0x30] sm:$0xff]
    %v47 = vld [vmem:[#allocation5 + $0x38] sm:$0xff]
    %v48 = vld [vmem:[#allocation5 + $0x40] sm:$0xff]
    %v49 = vld [vmem:[#allocation5 + $0x48] sm:$0xff]
    %v50 = vld [vmem:[#allocation5 + $0x50] sm:$0xff]
    %v51 = vld [vmem:[#allocation5 + $0x58] sm:$0xff]
    %v52 = vld [vmem:[#allocation5 + $0x60] sm:$0xff]
    %v53 = vld [vmem:[#allocation5 + $0x68] sm:$0xff]
    %v54 = vld [vmem:[#allocation5 + $0x70] sm:$0xff]
    %v55 = vld [vmem:[#allocation5 + $0x78] sm:$0xff]
    %56 = vmatprep.subr.mxu0 0.0
    %57 = vmatpush1.msra.mxu0 %v55
    %58 = vmatprep.subr.mxu0 0.0
    %59 = vmatpush1.msra.mxu0 %v54
    %60 = vmatprep.subr.mxu0 0.0
    %61 = vmatpush1.msra.mxu0 %v53
    %62 = vmatprep.subr.mxu0 0.0
    %63 = vmatpush1.msra.mxu0 %v52
    %64 = vmatprep.subr.mxu0 0.0
    %65 = vmatpush1.msra.mxu0 %v51
    %66 = vmatprep.subr.mxu0 0.0
    %67 = vmatpush1.msra.mxu0 %v50
    %68 = vmatprep.subr.mxu0 0.0
    %69 = vmatpush1.msra.mxu0 %v49
    %70 = vmatprep.subr.mxu0 0.0
    %71 = vmatpush1.msra.mxu0 %v48
    %72 = vmatprep.subr.mxu0 0.0
    %73 = vmatpush1.msra.mxu0 %v47
    %74 = vmatprep.subr.mxu0 0.0
    %75 = vmatpush1.msra.mxu0 %v46
    %76 = vmatprep.subr.mxu0 0.0
    %77 = vmatpush1.msra.mxu0 %v45
    %78 = vmatprep.subr.mxu0 0.0
    %79 = vmatpush1.msra.mxu0 %v44
    %80 = vmatprep.subr.mxu0 0.0
    %81 = vmatpush1.msra.mxu0 %v43
    %82 = vmatprep.subr.mxu0 0.0
    %83 = vmatpush1.msra.mxu0 %v42
    %84 = vmatprep.subr.mxu0 0.0
    %85 = vmatpush1.msra.mxu0 %v41
    %86 = vmatprep.subr.mxu0 0.0
    %87 = vmatpush1.msra.mxu0 %v40
    %88 = vmatprep.subr.mxu0 0.0
    %89 = vmatpush2.msra.mxu0 0.0
    %90 = vmatprep.subr.mxu0 0.0
    %91 = vmatpush2.msra.mxu0 0.0
    %92 = vmatprep.subr.mxu0 0.0
    %93 = vmatpush2.msra.mxu0 0.0
    %94 = vmatprep.subr.mxu0 0.0
    %95 = vmatpush2.msra.mxu0 0.0
    %96 = vmatprep.subr.mxu0 0.0
    %97 = vmatpush2.msra.mxu0 0.0
    %98 = vmatprep.subr.mxu0 0.0
    %99 = vmatpush2.msra.mxu0 0.0
    %100 = vmatprep.subr.mxu0 0.0
    %101 = vmatpush2.msra.mxu0 0.0
    %102 = vmatprep.subr.mxu0 0.0
    %103 = vmatpush2.msra.mxu0 0.0
    %104 = vmatprep.subr.mxu0 0.0
    %105 = vmatpush2.msra.mxu0 0.0
    %106 = vmatprep.subr.mxu0 0.0
    %107 = vmatpush2.msra.mxu0 0.0
    %108 = vmatprep.subr.mxu0 0.0
    %109 = vmatpush2.msra.mxu0 0.0
    %110 = vmatprep.subr.mxu0 0.0
    %111 = vmatpush2.msra.mxu0 0.0
    %112 = vmatprep.subr.mxu0 0.0
    %113 = vmatpush2.msra.mxu0 0.0
    %114 = vmatprep.subr.mxu0 0.0
    %115 = vmatpush2.msra.mxu0 0.0
    %116 = vmatprep.subr.mxu0 0.0
    %117 = vmatpush2.msra.mxu0 0.0
    %118 = vmatprep.subr.mxu0 0.0
    %119 = vmatpush2.msra.mxu0 0.0
    %120 = vmatprep.mubr.f32.mxu0 0.0
    %121 = vmatmul.mubr.f32.gmra.mxu0 %v39
    %v122 = vpop.f32.mrf.mxu0
    %v123 = vadd.f32 0.0, %v122
    %v124 = vpop.f32.mrf.mxu0
    %125 = vdwg.mxu0
    %v126 = vadd.f32 %v123, 1.0
    %v127 = vadd.f32 %v123, 1e-08
    %v128 = vrsqrt.pop %v127
    %v129 = vmul.f32 %v127, %v128
    %vm130 = vcmp.eq.f32.partialorder %v127, inf
    %v131 = vsel %vm130, %v127, %v129
    %vm132 = vcmp.eq.f32.partialorder %v127, 0.0
    %v133 = vand.u32 %v127, 2147483648
    %v134 = vsel %vm132, %v133, %v131
    %v135 = vmul.f32 %v126, %v134
    %v136 = vrcp.pop %v135
    %v137 = vmul.f32 %v123, %v136
    %v138 = vmul.f32 %v38, %v137
    %139 = vst [vmem:[#allocation7] sm:$0xff] %v138
    // Predicated region
    $region18: #{tpu_custom_call.1} parent=1 // pred_check
      _
    $region19: #{tpu_custom_call.1} parent=1 // pred_check_branch
      %141 = sbr.rel (0) target = $region21
    $region20: #{tpu_custom_call.1} parent=1 // pred_region
      %s143 = ssub.s32 128, 128
      %144 = vsyncadd [#allocation4], %s143
      %s146 = sshll.u32 [#allocation7], 4
      %s147 = int_to_ptr.vmem [resolvable:$true] %s146
      %149 = dma.vmem_to_hbm [thread:$0]  %s147, 128, %s2, [#allocation4]
    $region21: #{tpu_custom_call.1} parent=1 // pred_fallthru
      _
    // Predicated region
    $region22: #{tpu_custom_call.1} parent=1 // pred_check
      _
    $region23: #{tpu_custom_call.1} parent=1 // pred_check_branch
      %151 = sbr.rel (0) target = $region25
    $region24: #{tpu_custom_call.1} parent=1 // pred_region
      %152 = dma.done [#allocation4], 128
    $region25: #{tpu_custom_call.1} parent=1 // pred_fallthru
      _
    %153 = vsyncpa [#allocation3], 1
    %154 = vsyncpa [#allocation6], 1
    %155 = vsyncpa [#allocation4], 1

</llo_original>
